<compile_context>
chip_gen: v5e
topology: v5e:2x2
jax: 0.10.0
libtpu: 0.0.40
codegen_flags: <defaults>
</compile_context>

<pallas_src>
import math

import jax
import jax.numpy as jnp
from jax.experimental import pallas as pl
from jax.experimental.pallas import tpu as pltpu


_LANE = 128                     # TPU lane width (last-dim vreg extent)
_SUBLANE = 8                    # TPU sublane count for f32
_LANE_TILE_CAP = 2048           # max lanes per tile (f32 -> 8 KiB per sublane row)
_TILE_BYTES_TARGET = 2 << 20    # ~2 MiB per tile buffer; with double-buffered
                                # in + out that's ~8 MiB of VMEM, safe on all chips


def _build_pe_table(embedding_size: int, max_seq_length: int = 5000) -> jnp.ndarray:
    """Deterministic sinusoidal positional-encoding table, shape (max_seq, C), f32."""
    position = jnp.arange(0, max_seq_length, dtype=jnp.float32)[:, None]      # (L, 1)
    div_term = jnp.exp(
        jnp.arange(0, embedding_size, 2, dtype=jnp.float32)
        * -(math.log(10000.0) / embedding_size)
    )                                                                          # (ceil(C/2),)
    angles = position * div_term                                               # (L, ceil(C/2))
    pe = jnp.zeros((max_seq_length, embedding_size), dtype=jnp.float32)
    # Handles odd embedding_size gracefully (PyTorch original requires even C).
    pe = pe.at[:, 0::2].set(jnp.sin(angles)[:, : (embedding_size + 1) // 2])
    pe = pe.at[:, 1::2].set(jnp.cos(angles)[:, : embedding_size // 2])
    return pe


def _pe_add_kernel(x_ref, pe_ref, o_ref):
    # x_ref / o_ref: (row_tile, lane_tile) tile of the flattened activations.
    # pe_ref:        (1, lane_tile) tile of the flattened PE row; broadcasts
    #                over sublanes in the add (cheap VPU broadcast, no reshape).
    o_ref[...] = (x_ref[...] + pe_ref[...]).astype(o_ref.dtype)


def _largest_aligned_divisor(total: int, unit: int, cap: int) -> int:
    """Largest divisor of `total` that is a multiple of `unit` and <= `cap`.

    Falls back to `total` (full extent, always a legal BlockSpec dim) when the
    array is already small enough or cannot be unit-aligned-tiled.
    """
    if total <= cap or total % unit != 0:
        return total
    best = unit
    t = unit
    while t <= cap:
        if total % t == 0:
            best = t
        t += unit
    return best


def positional_encoding(x: jnp.ndarray, pe_table: jnp.ndarray) -> jnp.ndarray:
    """x: (B, N, C).  Returns x + pe[:N] broadcast over batch, same dtype as x."""
    B, N, C = x.shape
    L = N * C

    # Cast PE to the activation dtype outside the kernel (halves PE traffic for
    # bf16 models and avoids an in-kernel promote/downcast) and flatten both
    # operands so the last dim is lane-dense.
    pe_flat = pe_table[:N, :].astype(x.dtype).reshape(1, L)   # (1, N*C)
    x2 = x.reshape(B, L)                                      # (B, N*C)

    dtype_bytes = jnp.dtype(x.dtype).itemsize

    # Lane tile: large multiple of 128 dividing L (or the full L if it can't be tiled).
    lane_tile = _largest_aligned_divisor(L, _LANE, _LANE_TILE_CAP)
    # Row tile: as many rows as fit the per-buffer byte target, multiple of 8
    # (or the full B if B is small / not 8-aligned).
    row_cap = max(_SUBLANE, (_TILE_BYTES_TARGET // max(1, lane_tile * dtype_bytes)))
    row_cap = max(_SUBLANE, row_cap - (row_cap % _SUBLANE))
    row_tile = _largest_aligned_divisor(B, _SUBLANE, row_cap)

    # Grid: (lane tiles, row tiles).  The row axis is innermost (fastest), so the
    # PE block index (0, j) is constant across consecutive steps and Pallas keeps
    # the PE tile resident instead of re-DMAing it every iteration.
    grid = (L // lane_tile, B // row_tile)

    out2 = pl.pallas_call(
        _pe_add_kernel,
        out_shape=jax.ShapeDtypeStruct((B, L), x.dtype),
        grid_spec=pltpu.PrefetchScalarGridSpec(
            num_scalar_prefetch=0,
            grid=grid,
            in_specs=[
                pl.BlockSpec((row_tile, lane_tile), lambda j, i: (i, j)),  # x
                pl.BlockSpec((1, lane_tile), lambda j, i: (0, j)),         # pe (row-resident)
            ],
            out_specs=pl.BlockSpec((row_tile, lane_tile), lambda j, i: (i, j)),
        ),
        compiler_params=pltpu.CompilerParams(
            dimension_semantics=("parallel", "parallel"),  # lets v7x shard over 2 TCs
            vmem_limit_bytes=64 * 1024 * 1024,             # headroom for bigger tiles
        ),
        # The op is effectively x += pe: alias input 0 (x2) to the output so XLA
        # can reuse the buffer when it is donated (no change to read/write volume).
        input_output_aliases={0: 0},
    )(x2, pe_flat)

    return out2.reshape(B, N, C)


if __name__ == "__main__":
    # Small shapes consistent with the module's forward contract: (B, N, C).
    B, N, C = 2, 8, 32
    max_seq_length = 64  # module default is 5000; small synthetic table here

    key = jax.random.PRNGKey(0)
    x = jax.random.normal(key, (B, N, C), dtype=jnp.float32)

    pe_table = _build_pe_table(C, max_seq_length)

    # Compute the pure-JAX reference BEFORE the kernel call (x may be aliased /
    # donated into the kernel output).
    ref = x + pe_table[None, :N, :].astype(x.dtype)

    out = positional_encoding(x, pe_table)
    out = jax.block_until_ready(out)

    assert out.shape == (B, N, C)
    assert jnp.allclose(out, ref, atol=1e-6), "mismatch vs reference"

    print("KERNEL_OK")
</pallas_src>

<mosaic_0001>
module attributes {stable_mosaic.version = 11 : i64} {
  func.func @_pe_add_kernel(%arg0: i32, %arg1: i32, %arg2: memref<2x256xf32, #tpu.memory_space<vmem>>, %arg3: memref<1x256xf32, #tpu.memory_space<vmem>>, %arg4: memref<2x256xf32, #tpu.memory_space<vmem>>) attributes {dimension_semantics = [#tpu.dimension_semantics<parallel>, #tpu.dimension_semantics<parallel>], iteration_bounds = array<i64: 1, 1>, scalar_prefetch = 0 : i64, scratch_operands = 0 : i64, tpu.core_type = #tpu.core_type<tc>, window_params = [{transform_indices = @transform_0, window_bounds = array<i64: 2, 256>}, {transform_indices = @transform_1, window_bounds = array<i64: 1, 256>}, {transform_indices = @transform_2, window_bounds = array<i64: 2, 256>}]} {
    %c0 = arith.constant 0 : index
    %c0_0 = arith.constant 0 : index
    %0 = vector.load %arg2[%c0, %c0_0] : memref<2x256xf32, #tpu.memory_space<vmem>>, vector<2x256xf32>
    %c0_1 = arith.constant 0 : index
    %c0_2 = arith.constant 0 : index
    %1 = vector.load %arg3[%c0_1, %c0_2] : memref<1x256xf32, #tpu.memory_space<vmem>>, vector<1x256xf32>
    %2 = vector.broadcast %1 : vector<1x256xf32> to vector<2x256xf32>
    %3 = arith.addf %0, %2 : vector<2x256xf32>
    %c0_3 = arith.constant 0 : index
    %c0_4 = arith.constant 0 : index
    %4 = vector.load %arg4[%c0_3, %c0_4] : memref<2x256xf32, #tpu.memory_space<vmem>>, vector<2x256xf32>
    tpu.vector_store %arg4[%c0_3, %c0_4], %3 {strides = array<i32>} : memref<2x256xf32, #tpu.memory_space<vmem>>, vector<2x256xf32>,
    return
  }
  func.func @transform_0(%arg0: i32, %arg1: i32) -> (i32, i32) {
    %c0_i32 = arith.constant 0 : i32
    return %arg1, %arg0 : i32, i32
  }
  func.func @transform_1(%arg0: i32, %arg1: i32) -> (i32, i32) {
    %c0_i32 = arith.constant 0 : i32
    %c0_i32_0 = arith.constant 0 : i32
    return %c0_i32, %arg0 : i32, i32
  }
  func.func @transform_2(%arg0: i32, %arg1: i32) -> (i32, i32) {
    %c0_i32 = arith.constant 0 : i32
    return %arg1, %arg0 : i32, i32
  }
}

</mosaic_0001>

<llo_original>
// kernel: tpu_custom_call.1
$region0: #{tpu_custom_call.1}
  #allocation0 [shape = 'u32[]', space=smem, size = 0x4, offset = 0x4, fixed_abs, tag = 'smem constant byte address 0x4 - core index']
  #allocation1 [shape = 'u32[72,128]{1,0:T(1,128)}', space=vmem, size = 0x9000, scoped, tag = 'internal scratch']
  %s0 = inlined_call_operand.hbm [shape: f32[2,256], index: 0, kind: input, shape index: {}, may-alias: {0,2}]
  %s1 = inlined_call_operand.vmem [shape: f32[1,256], index: 1, kind: input, shape index: {}]
  %s2 = inlined_call_operand.hbm [shape: f32[2,256], index: 2, kind: output, shape index: {}, may-alias: {0,2}]
  %s3 = sld [smem:[#allocation0]]
  $region22: #{tpu_custom_call.1} parent=0
    _
  %s5 = ssub.s32 1, %s3
  %s6 = scalar_select 0, %s5, %s3
  $region1: #{tpu_custom_call.1} parent=0
    #allocation2 [shape = 'u8[2048]{0}', space=vmem, size = 0x800, scoped, tag = 'input window, operand 0, single buffered']
    #allocation3 [shape = 's32[1]{0}', space=sflag, size = 0x4, scoped, tag = 'scoped memory for tpu_custom_call.1']
    #allocation4 [shape = 's32[1]{0}', space=sflag, size = 0x4, scoped, tag = 'scoped memory for tpu_custom_call.1']
    #allocation5 [shape = 'u8[2048]{0}', space=vmem, size = 0x800, scoped, tag = 'output window, operand 0, single buffered']
    %7 = vsyncpa [#allocation3], 0
    %8 = vsyncpa [#allocation4], 0
    // Predicated region
    $region2: #{tpu_custom_call.1} parent=1 // pred_check
      _
    $region3: #{tpu_custom_call.1} parent=1 // pred_check_branch
      %10 = sbr.rel (0) target = $region5
    $region4: #{tpu_custom_call.1} parent=1 // pred_region
      %12 = vsyncadd [#allocation3], 0
      %s14 = sshll.u32 %s0, 4
      %s15 = int_to_ptr.hbm [resolvable:$true] %s14
      %s16 = sshll.u32 [#allocation2], 4
      %s17 = int_to_ptr.vmem [resolvable:$true] %s16
      %19 = dma.hbm_to_vmem [thread:$0]  %s15, 64, %s17, [#allocation3]
    $region5: #{tpu_custom_call.1} parent=1 // pred_fallthru
      _
    // Predicated region
    $region6: #{tpu_custom_call.1} parent=1 // pred_check
      _
    $region7: #{tpu_custom_call.1} parent=1 // pred_check_branch
      %21 = sbr.rel (0) target = $region9
    $region8: #{tpu_custom_call.1} parent=1 // pred_region
      _
    $region9: #{tpu_custom_call.1} parent=1 // pred_fallthru
      _
    // Predicated region
    $region10: #{tpu_custom_call.1} parent=1 // pred_check
      _
    $region11: #{tpu_custom_call.1} parent=1 // pred_check_branch
      %23 = sbr.rel (0) target = $region13
    $region12: #{tpu_custom_call.1} parent=1 // pred_region
      %25 = dma.done [#allocation3], 64
    $region13: #{tpu_custom_call.1} parent=1 // pred_fallthru
      _
    %v26 = vld [vmem:[#allocation2] sm:$0xf]
    %v27 = vld [vmem:[%s1] sm:$0x3]
    %v29 = vperm.slane %v27, 0
    %v30 = vperm.slane %v27, 1
    %v31 = vrot.slane %v30, 6
    %vm32 = vcmask 1041408
    %v33 = vsel %vm32, %v29, %v31
    %v35 = vadd.f32 %v26, %v33
    %36 = vst [vmem:[#allocation5] sm:$0xf] %v35
    // Predicated region
    $region14: #{tpu_custom_call.1} parent=1 // pred_check
      _
    $region15: #{tpu_custom_call.1} parent=1 // pred_check_branch
      %38 = sbr.rel (0) target = $region17
    $region16: #{tpu_custom_call.1} parent=1 // pred_region
      %40 = vsyncadd [#allocation4], 0
      %s42 = sshll.u32 [#allocation5], 4
      %s43 = int_to_ptr.vmem [resolvable:$true] %s42
      %s44 = sshll.u32 %s2, 4
      %s45 = int_to_ptr.hbm [resolvable:$true] %s44
      %47 = dma.vmem_to_hbm [thread:$0]  %s43, 64, %s45, [#allocation4]
    $region17: #{tpu_custom_call.1} parent=1 // pred_fallthru
      _
    // Predicated region
    $region18: #{tpu_custom_call.1} parent=1 // pred_check
      _
    $region19: #{tpu_custom_call.1} parent=1 // pred_check_branch
      %49 = sbr.rel (0) target = $region21
    $region20: #{tpu_custom_call.1} parent=1 // pred_region
      %51 = dma.done [#allocation4], 64
    $region21: #{tpu_custom_call.1} parent=1 // pred_fallthru
      _
    %52 = vsyncpa [#allocation3], 1
    %53 = vsyncpa [#allocation4], 1

</llo_original>
